<compile_context>
chip_gen: v7x
topology: tpu7x:2x2x1
jax: 0.10.0
libtpu: 0.0.40
codegen_flags: <defaults>
</compile_context>

<pallas_src>
import functools
import math

import jax
import jax.numpy as jnp
from jax.experimental import pallas as pl
from jax.experimental.pallas import tpu as pltpu

LANE = 128
SUBLANE = 8


def _round_up(x, m):
    return (x + m - 1) // m * m


def _pad2(a, rows, cols):
    return jnp.pad(a, ((0, rows - a.shape[0]), (0, cols - a.shape[1])))


# ---------------------------------------------------------------------------
# Fused kernel:
#   per dst-row tile i:   acc  = sum_k  A[i, k] @ XW1[k]          (bf16 MXU)
#   at k == last:         h1   = relu(acc + b1)                   (f32 VPU)
#                         part = sum_rows( r[i] * h1 )            (VPU + XLU)
#   part (1, HP) is replicated to an (8, HP) output block so the output stays
#   (8,128)-aligned and the i axis can be 'parallel'.
# grid = (dst-row tiles [parallel], source-node tiles [arbitrary/reduction])
# ---------------------------------------------------------------------------
def _gcn_kernel(a_ref, xw1_ref, b1_ref, r_ref, out_ref, acc_ref, *, tk):
    k = pl.program_id(1)

    @pl.when(k == 0)
    def _():
        acc_ref[...] = jnp.zeros_like(acc_ref)

    # XW1 is fully VMEM-resident (constant index_map); slice its K block here.
    ks = pl.multiple_of(k * tk, tk)
    acc_ref[...] += jnp.dot(a_ref[...], xw1_ref[pl.ds(ks, tk), :],
                            preferred_element_type=jnp.float32)

    @pl.when(k == pl.num_programs(1) - 1)
    def _():
        h1 = jnp.maximum(acc_ref[...] + b1_ref[...], 0.0)           # (TM, HP) f32
        # Fused layer-2 aggregation + mean_nodes: weight node rows by
        # r = colsum(A_hat)/N (zero on padded nodes) and reduce over rows.
        partial = jnp.sum(h1 * r_ref[...], axis=0, keepdims=True)   # (1, HP)
        out_ref[...] = jnp.broadcast_to(partial, out_ref.shape)     # (8, HP)


def gcn_forward(a_hat, x, w1, b1, w2, b2, *, tm=256, tk=512,
                vmem_limit_bytes=48 * 1024 * 1024):
    n_nodes, _ = x.shape
    h_feats = w1.shape[1]

    # Clamp tiles for small graphs; pad node count so both tiles divide it.
    tm = min(tm, _round_up(n_nodes, LANE))
    tk = min(tk, _round_up(n_nodes, LANE))
    assert tm % LANE == 0 and tk % LANE == 0
    n_pad = _round_up(n_nodes, math.lcm(tm, tk))
    hp = _round_up(h_feats, LANE)
    gm, gk = n_pad // tm, n_pad // tk

    bf = jnp.bfloat16

    # --- tiny XLA prologue ---------------------------------------------------
    # Project before aggregate: XW1 = X @ W1  (O(N*F*H) << O(N^2*H)).
    xw1 = jnp.dot(x.astype(bf), w1.astype(bf), preferred_element_type=jnp.float32)
    xw1_p = _pad2(xw1, n_pad, hp).astype(bf)

    # r = colsum(A_hat)/N folds layer-2 aggregation + mean_nodes into a single
    # weighted row-reduction of h1.  Padded nodes get weight 0.
    r = a_hat.sum(axis=0) / n_nodes                                   # (N,)
    r_p = jnp.pad(r, (0, n_pad - n_nodes)).reshape(n_pad, 1).astype(jnp.float32)

    # Padded A rows & cols are zero -> padded nodes contribute nothing.
    a_p = _pad2(a_hat, n_pad, n_pad).astype(bf)
    b1_p = _pad2(b1.reshape(1, -1).astype(jnp.float32), 1, hp)

    flops = 2 * n_pad * n_pad * hp + 3 * n_pad * hp
    bytes_accessed = (2 * n_pad * n_pad          # A_hat (bf16), single pass
                      + 2 * n_pad * hp           # XW1 (bf16), loaded once
                      + 4 * n_pad                # r
                      + 4 * hp                   # b1
                      + 4 * gm * SUBLANE * hp)   # partial output rows

    partials = pl.pallas_call(
        functools.partial(_gcn_kernel, tk=tk),
        out_shape=jax.ShapeDtypeStruct((gm * SUBLANE, hp), jnp.float32),
        grid_spec=pltpu.PrefetchScalarGridSpec(
            num_scalar_prefetch=0,
            grid=(gm, gk),
            in_specs=[
                pl.BlockSpec((tm, tk), lambda i, k: (i, k)),      # A_hat tile
                pl.BlockSpec((n_pad, hp), lambda i, k: (0, 0)),   # XW1 (resident)
                pl.BlockSpec((1, hp), lambda i, k: (0, 0)),       # b1
                pl.BlockSpec((tm, 1), lambda i, k: (i, 0)),       # r slice
            ],
            out_specs=pl.BlockSpec((SUBLANE, hp), lambda i, k: (i, 0)),
            scratch_shapes=[pltpu.VMEM((tm, hp), jnp.float32)],
        ),
        compiler_params=pltpu.CompilerParams(
            dimension_semantics=("parallel", "arbitrary"),
            vmem_limit_bytes=vmem_limit_bytes,
        ),
        cost_estimate=pl.CostEstimate(flops=flops, transcendentals=0,
                                      bytes_accessed=bytes_accessed),
    )(a_p, xw1_p, b1_p, r_p)

    # --- tiny XLA epilogue ---------------------------------------------------
    # One partial row per dst-row tile (replicated over 8 sublanes): take row 0
    # of each block, sum over tiles, project through W2, add b2 (all f32).
    s = partials.reshape(gm, SUBLANE, hp)[:, 0, :].sum(axis=0)        # (HP,)
    out = s[None, :h_feats] @ w2.astype(jnp.float32) + b2.reshape(1, -1)
    return out


def normalize_adjacency(adj):
    """DGL GraphConv norm='both' with zero-degree clamp (allow_zero_in_degree)."""
    out_deg = jnp.maximum(adj.sum(axis=1), 1.0)   # out-degree of source nodes
    in_deg = jnp.maximum(adj.sum(axis=0), 1.0)    # in-degree of destination nodes
    norm_src = out_deg ** -0.5                    # (N,)
    norm_dst = in_deg ** -0.5                     # (N,)
    # A_hat[v, u] = norm_dst[v] * A[u, v] * norm_src[u]
    return (adj.T * norm_src[None, :]) * norm_dst[:, None]


# TODO(synk): for genuinely large sparse graphs, replace the dense A_hat with a
# blocked-sparse gather (neighbor offsets via PrefetchScalarGridSpec) instead of
# a dense (N, N) matrix; XW1 residency would also become tiled at that scale.

if __name__ == "__main__":
    # Small, but > one 128-row tile so the 2x2 grid (parallel rows + K
    # reduction with init/finalize) is exercised.
    N_NODES = 200
    IN_FEATS = 8
    H_FEATS = 16
    NUM_CLASSES = 4

    key = jax.random.PRNGKey(0)
    k_adj, k_x, k_w1, k_b1, k_w2, k_b2 = jax.random.split(key, 6)

    # Deterministic random directed graph (dense adjacency).
    adj = jax.random.bernoulli(k_adj, p=0.05, shape=(N_NODES, N_NODES)).astype(jnp.float32)
    a_hat = normalize_adjacency(adj)

    x = jax.random.normal(k_x, (N_NODES, IN_FEATS), dtype=jnp.float32)
    w1 = jax.random.normal(k_w1, (IN_FEATS, H_FEATS), dtype=jnp.float32) * (1.0 / jnp.sqrt(IN_FEATS))
    b1 = jax.random.normal(k_b1, (H_FEATS,), dtype=jnp.float32) * 0.1
    w2 = jax.random.normal(k_w2, (H_FEATS, NUM_CLASSES), dtype=jnp.float32) * (1.0 / jnp.sqrt(H_FEATS))
    b2 = jax.random.normal(k_b2, (NUM_CLASSES,), dtype=jnp.float32) * 0.1

    # tm=tk=128 so this 200-node demo pads to 256 and runs a 2x2 grid; for real
    # graphs keep the 256/512 defaults (v6e/v7x) or pass tm=128 on v5e.
    out = gcn_forward(a_hat, x, w1, b1, w2, b2, tm=128, tk=128)
    out = jax.block_until_ready(out)

    # Reference in plain JAX, mirroring the kernel's matmul dtypes
    # (bf16 operands, f32 accumulation) but the original op ordering.
    bf = jnp.bfloat16
    xw1_r = jnp.dot(x.astype(bf), w1.astype(bf), preferred_element_type=jnp.float32)
    h1_r = jnp.maximum(
        jnp.dot(a_hat.astype(bf), xw1_r.astype(bf), preferred_element_type=jnp.float32)
        + b1[None, :], 0.0)
    h2_r = jnp.dot(a_hat, h1_r)                           # layer-2 aggregation, f32
    ref = jnp.mean(h2_r, axis=0, keepdims=True) @ w2 + b2[None, :]

    assert out.shape == (1, NUM_CLASSES)
    assert jnp.allclose(out, ref, atol=1e-2, rtol=1e-2), (out, ref)

    print("KERNEL_OK")
</pallas_src>

<mosaic_0001>
module attributes {stable_mosaic.version = 11 : i64} {
  func.func @_gcn_kernel(%arg0: i32, %arg1: i32, %arg2: memref<128x128xbf16, #tpu.memory_space<vmem>>, %arg3: memref<256x128xbf16, #tpu.memory_space<vmem>>, %arg4: memref<1x128xf32, #tpu.memory_space<vmem>>, %arg5: memref<128x1xf32, #tpu.memory_space<vmem>>, %arg6: memref<8x128xf32, #tpu.memory_space<vmem>>, %arg7: memref<128x128xf32, #tpu.memory_space<vmem>>) attributes {dimension_semantics = [#tpu.dimension_semantics<parallel>, #tpu.dimension_semantics<arbitrary>], iteration_bounds = array<i64: 2, 2>, scalar_prefetch = 0 : i64, scratch_operands = 1 : i64, tpu.core_type = #tpu.core_type<tc>, window_params = [{transform_indices = @transform_0, window_bounds = array<i64: 128, 128>}, {pipeline_mode = #tpu.pipeline_mode<synchronous>, transform_indices = @transform_1, window_bounds = array<i64: 256, 128>}, {pipeline_mode = #tpu.pipeline_mode<synchronous>, transform_indices = @transform_2, window_bounds = array<i64: 1, 128>}, {transform_indices = @transform_3, window_bounds = array<i64: 128, 1>}, {transform_indices = @transform_4, window_bounds = array<i64: 8, 128>}]} {
    %c0_i32 = arith.constant 0 : i32
    %0 = arith.cmpi eq, %arg1, %c0_i32 : i32
    %1 = arith.extui %0 : i1 to i32
    %c0_i32_0 = arith.constant 0 : i32
    %2 = arith.cmpi ne, %1, %c0_i32_0 : i32
    scf.if %2 {
      %cst_8 = arith.constant 0.000000e+00 : f32
      %15 = vector.broadcast %cst_8 : f32 to vector<128x128xf32>
      %c0_9 = arith.constant 0 : index
      %c0_10 = arith.constant 0 : index
      %16 = vector.load %arg7[%c0_9, %c0_10] : memref<128x128xf32, #tpu.memory_space<vmem>>, vector<128x128xf32>
      tpu.vector_store %arg7[%c0_9, %c0_10], %15 {strides = array<i32>} : memref<128x128xf32, #tpu.memory_space<vmem>>, vector<128x128xf32>,
    } else {
    }
    %c128_i32 = arith.constant 128 : i32
    %3 = arith.muli %arg1, %c128_i32 : i32
    %4 = tpu.assume_multiple %3, 128 : i32
    %c0 = arith.constant 0 : index
    %c0_1 = arith.constant 0 : index
    %5 = vector.load %arg7[%c0, %c0_1] : memref<128x128xf32, #tpu.memory_space<vmem>>, vector<128x128xf32>
    %c0_2 = arith.constant 0 : index
    %c0_3 = arith.constant 0 : index
    %6 = vector.load %arg2[%c0_2, %c0_3] : memref<128x128xbf16, #tpu.memory_space<vmem>>, vector<128x128xbf16>
    %7 = arith.index_cast %4 : i32 to index
    %c0_4 = arith.constant 0 : index
    %8 = vector.load %arg3[%7, %c0_4] : memref<256x128xbf16, #tpu.memory_space<vmem>>, vector<128x128xbf16>
    %cst = arith.constant dense<0.000000e+00> : vector<128x128xf32>
    %9 = tpu.matmul %6, %8, %cst {dimension_numbers = #tpu.dot_dimension_numbers<[1], [0], [0], [1], [0, 0, 1, 1], [], []>} : vector<128x128xbf16>, vector<128x128xbf16>, vector<128x128xf32> -> vector<128x128xf32>
    %10 = arith.addf %5, %9 : vector<128x128xf32>
    %c0_5 = arith.constant 0 : index
    %c0_6 = arith.constant 0 : index
    %11 = vector.load %arg7[%c0_5, %c0_6] : memref<128x128xf32, #tpu.memory_space<vmem>>, vector<128x128xf32>
    tpu.vector_store %arg7[%c0_5, %c0_6], %10 {strides = array<i32>} : memref<128x128xf32, #tpu.memory_space<vmem>>, vector<128x128xf32>,
    %c1_i32 = arith.constant 1 : i32
    %12 = arith.cmpi eq, %arg1, %c1_i32 : i32
    %13 = arith.extui %12 : i1 to i32
    %c0_i32_7 = arith.constant 0 : i32
    %14 = arith.cmpi ne, %13, %c0_i32_7 : i32
    scf.if %14 {
      %c0_8 = arith.constant 0 : index
      %c0_9 = arith.constant 0 : index
      %15 = vector.load %arg7[%c0_8, %c0_9] : memref<128x128xf32, #tpu.memory_space<vmem>>, vector<128x128xf32>
      %c0_10 = arith.constant 0 : index
      %c0_11 = arith.constant 0 : index
      %16 = vector.load %arg4[%c0_10, %c0_11] : memref<1x128xf32, #tpu.memory_space<vmem>>, vector<1x128xf32>
      %17 = vector.broadcast %16 : vector<1x128xf32> to vector<128x128xf32>
      %18 = arith.addf %15, %17 : vector<128x128xf32>
      %cst_12 = arith.constant 0.000000e+00 : f32
      %19 = vector.broadcast %cst_12 : f32 to vector<128x128xf32>
      %20 = arith.maximumf %18, %19 : vector<128x128xf32>
      %c0_13 = arith.constant 0 : index
      %c0_14 = arith.constant 0 : index
      %21 = vector.load %arg5[%c0_13, %c0_14] : memref<128x1xf32, #tpu.memory_space<vmem>>, vector<128x1xf32>
      %22 = vector.broadcast %21 : vector<128x1xf32> to vector<128x128xf32>
      %23 = arith.mulf %20, %22 : vector<128x128xf32>
      %cst_15 = arith.constant dense<0.000000e+00> : vector<128xf32>
      %24 = vector.multi_reduction <add>, %23, %cst_15 [0] : vector<128x128xf32> to vector<128xf32>
      %25 = vector.shape_cast %24 : vector<128xf32> to vector<1x128xf32>
      %26 = vector.shape_cast %25 : vector<1x128xf32> to vector<1x128xf32>
      %27 = vector.broadcast %26 : vector<1x128xf32> to vector<8x128xf32>
      %c0_16 = arith.constant 0 : index
      %c0_17 = arith.constant 0 : index
      %28 = vector.load %arg6[%c0_16, %c0_17] : memref<8x128xf32, #tpu.memory_space<vmem>>, vector<8x128xf32>
      tpu.vector_store %arg6[%c0_16, %c0_17], %27 {strides = array<i32>} : memref<8x128xf32, #tpu.memory_space<vmem>>, vector<8x128xf32>,
    } else {
    }
    return
  }
  func.func @transform_0(%arg0: i32, %arg1: i32) -> (i32, i32) {
    %c0_i32 = arith.constant 0 : i32
    return %arg0, %arg1 : i32, i32
  }
  func.func @transform_1(%arg0: i32, %arg1: i32) -> (i32, i32) {
    %c0_i32 = arith.constant 0 : i32
    %c0_i32_0 = arith.constant 0 : i32
    %c0_i32_1 = arith.constant 0 : i32
    return %c0_i32, %c0_i32_0 : i32, i32
  }
  func.func @transform_2(%arg0: i32, %arg1: i32) -> (i32, i32) {
    %c0_i32 = arith.constant 0 : i32
    %c0_i32_0 = arith.constant 0 : i32
    %c0_i32_1 = arith.constant 0 : i32
    return %c0_i32, %c0_i32_0 : i32, i32
  }
  func.func @transform_3(%arg0: i32, %arg1: i32) -> (i32, i32) {
    %c0_i32 = arith.constant 0 : i32
    %c0_i32_0 = arith.constant 0 : i32
    return %arg0, %c0_i32 : i32, i32
  }
  func.func @transform_4(%arg0: i32, %arg1: i32) -> (i32, i32) {
    %c0_i32 = arith.constant 0 : i32
    %c0_i32_0 = arith.constant 0 : i32
    return %arg0, %c0_i32 : i32, i32
  }
}

</mosaic_0001>

<llo_original>
// kernel: tpu_custom_call.1
$region0: #{tpu_custom_call.1}
  #allocation0 [shape = 'u32[]', space=smem, size = 0x4, offset = 0x4, fixed_abs, tag = 'smem constant byte address 0x4 - core index']
  #allocation1 [shape = 'u32[144,128]{1,0:T(1,128)}', space=vmem, size = 0x12000, scoped, tag = 'internal scratch']
  #allocation2 [shape = 'f32[128,128]{1,0:T(8,128)}', space=vmem, size = 0x10000, scoped, tag = 'scratch operand']
  %s0 = inlined_call_operand.vmem [shape: bf16[256,256], index: 0, kind: input, shape index: {}]
  %s1 = inlined_call_operand.hbm [shape: bf16[256,128], index: 1, kind: input, shape index: {}]
  %s2 = inlined_call_operand.vmem [shape: f32[1,128], index: 2, kind: input, shape index: {}]
  %s3 = inlined_call_operand.vmem [shape: f32[256,1], index: 3, kind: input, shape index: {}]
  %s4 = inlined_call_operand.hbm [shape: f32[16,128], index: 4, kind: output, shape index: {}]
  %s5 = sld [smem:[#allocation0]]
  $region102: #{tpu_custom_call.1} parent=0
    _
  %s7 = ssub.s32 1, %s5
  %s8 = scalar_select 0, %s7, %s5
  $region1: #{tpu_custom_call.1} parent=0
    #allocation3 [shape = 'u8[65536]{0}', space=vmem, size = 0x10000, scoped, tag = 'input window, operand 0']
    #allocation4 [shape = 'u8[65536]{0}', space=vmem, size = 0x10000, scoped, tag = 'input window, operand 1, single buffered']
    #allocation5 [shape = 's32[2]{0}', space=sflag, size = 0x8, scoped, tag = 'scoped memory for tpu_custom_call.1']
    #allocation6 [shape = 's32[2]{0}', space=sflag, size = 0x8, scoped, tag = 'scoped memory for tpu_custom_call.1']
    #allocation7 [shape = 'u8[8192]{0}', space=vmem, size = 0x2000, scoped, tag = 'output window, operand 0']
    %9 = vsyncpa [#allocation5], 0
    %10 = vsyncpa [#allocation6], 0
    %s11 = scalar_lea.sflag [#allocation6], 1
    %12 = vsyncpa %s11, 0
    loop: start=0, step=1, limit=6
    $region2: #{tpu_custom_call.1} parent=1 // loop_pre_header
      _
    $region3: #{tpu_custom_call.1} parent=1 // loop_header
      %s14 = sphi 0, %s18
      %p15 = scmp.ge.s32.totalorder %s14, 6
      %s21 = sphi 0, %s33
      %s22 = sphi 0, %s29
      %s23 = sphi 0, %s21
      %s24 = sphi 0, %s22
      %s25 = sphi 0, %s23
      %s26 = sphi 0, %s24
      %s38 = sphi 0, %s40
      %s41 = sphi 0, %s38
      %s42 = sphi 0, %s41
      %s58 = sphi 0, %s42
      %s62 = sphi 0, %s62
      %s64 = sphi 0, %s62
      %s65 = sphi 0, %s64
      %s79 = sphi 0, %s65
      %s83 = sphi 0, %s83
      %s85 = sphi 0, %s83
      %s86 = sphi 0, %s85
      %s100 = sphi 0, %s86
      %s106 = sphi 0, %s108
      %s109 = sphi 0, %s106
      %s110 = sphi 0, %s109
      %s126 = sphi 0, %s110
      %s132 = sphi 0, %s134
      %s135 = sphi 0, %s132
      %s136 = sphi 0, %s135
      %s152 = sphi 0, %s136
    $region4: #{tpu_custom_call.1} parent=1 // loop_header_branch
      %17 = sbr.rel (%p15) target = $region8
    $region5: #{tpu_custom_call.1} parent=1 // loop_body
      %s19 = ssub.s32 %s14, 1
      %s20 = ssub.s32 %s14, 2
      %s27 = sadd.s32 1, %s22
      %p28 = scmp.ge.s32.totalorder %s27, 2
      %s29 = scalar_select %p28, 0, %s27
      %s30 = sadd.s32 1, %s21
      %s31 = scalar_select %p28, %s30, %s21
      %p32 = scmp.ge.s32.totalorder %s31, 2
      %s33 = scalar_select %p32, 0, %s31
      %s34 = ssub.s32 %s21, %s33
      %s35 = ssub.s32 %s22, %s29
      %s36 = sor.u32 %s34, %s35
      %p37 = scmp.eq.s32.totalorder %s36, 0
      %s39 = sadd.s32 %s38, 1
      %s40 = scalar_select %p37, %s38, %s39
      %p43 = pneg %p37
      %p44 = scmp.eq.s32.totalorder %s14, 3
      %p45 = por %p43, %p44
      %p46 = scmp.ne.s32.totalorder %s38, %s41
      %p47 = scmp.eq.s32.totalorder %s14, 0
      %p48 = por %p46, %p47
      %p49 = scmp.ne.s32.totalorder %s38, %s41
      %p50 = scmp.eq.s32.totalorder %s19, 3
      %p51 = por %p49, %p50
      %p52 = scmp.ne.s32.totalorder %s41, %s42
      %p53 = scmp.eq.s32.totalorder %s19, 0
      %p54 = por %p52, %p53
      %p55 = scmp.ne.s32.totalorder %s41, %s42
      %p56 = scmp.eq.s32.totalorder %s20, 3
      %p57 = por %p55, %p56
      %p59 = scmp.ne.s32.totalorder %s42, %s58
      %p60 = scmp.eq.s32.totalorder %s20, 0
      %p61 = por %p59, %p60
      %s63 = sadd.s32 %s62, 1
      %p66 = scmp.eq.s32.totalorder %s14, 3
      %p67 = scmp.ne.s32.totalorder %s62, %s64
      %p68 = scmp.eq.s32.totalorder %s14, 0
      %p69 = por %p67, %p68
      %p70 = scmp.ne.s32.totalorder %s62, %s64
      %p71 = scmp.eq.s32.totalorder %s19, 3
      %p72 = por %p70, %p71
      %p73 = scmp.ne.s32.totalorder %s64, %s65
      %p74 = scmp.eq.s32.totalorder %s19, 0
      %p75 = por %p73, %p74
      %p76 = scmp.ne.s32.totalorder %s64, %s65
      %p77 = scmp.eq.s32.totalorder %s20, 3
      %p78 = por %p76, %p77
      %p80 = scmp.ne.s32.totalorder %s65, %s79
      %p81 = scmp.eq.s32.totalorder %s20, 0
      %p82 = por %p80, %p81
      %s84 = sadd.s32 %s83, 1
      %p87 = scmp.eq.s32.totalorder %s14, 3
      %p88 = scmp.ne.s32.totalorder %s83, %s85
      %p89 = scmp.eq.s32.totalorder %s14, 0
      %p90 = por %p88, %p89
      %p91 = scmp.ne.s32.totalorder %s83, %s85
      %p92 = scmp.eq.s32.totalorder %s19, 3
      %p93 = por %p91, %p92
      %p94 = scmp.ne.s32.totalorder %s85, %s86
      %p95 = scmp.eq.s32.totalorder %s19, 0
      %p96 = por %p94, %p95
      %p97 = scmp.ne.s32.totalorder %s85, %s86
      %p98 = scmp.eq.s32.totalorder %s20, 3
      %p99 = por %p97, %p98
      %p101 = scmp.ne.s32.totalorder %s86, %s100
      %p102 = scmp.eq.s32.totalorder %s20, 0
      %p103 = por %p101, %p102
      %s104 = ssub.s32 %s21, %s33
      %p105 = scmp.eq.s32.totalorder %s104, 0
      %s107 = sadd.s32 %s106, 1
      %s108 = scalar_select %p105, %s106, %s107
      %p111 = pneg %p105
      %p112 = scmp.eq.s32.totalorder %s14, 3
      %p113 = por %p111, %p112
      %p114 = scmp.ne.s32.totalorder %s106, %s109
      %p115 = scmp.eq.s32.totalorder %s14, 0
      %p116 = por %p114, %p115
      %p117 = scmp.ne.s32.totalorder %s106, %s109
      %p118 = scmp.eq.s32.totalorder %s19, 3
      %p119 = por %p117, %p118
      %p120 = scmp.ne.s32.totalorder %s109, %s110
      %p121 = scmp.eq.s32.totalorder %s19, 0
      %p122 = por %p120, %p121
      %p123 = scmp.ne.s32.totalorder %s109, %s110
      %p124 = scmp.eq.s32.totalorder %s20, 3
      %p125 = por %p123, %p124
      %p127 = scmp.ne.s32.totalorder %s110, %s126
      %p128 = scmp.eq.s32.totalorder %s20, 0
      %p129 = por %p127, %p128
      %s130 = ssub.s32 %s21, %s33
      %p131 = scmp.eq.s32.totalorder %s130, 0
      %s133 = sadd.s32 %s132, 1
      %s134 = scalar_select %p131, %s132, %s133
      %p137 = pneg %p131
      %p138 = scmp.eq.s32.totalorder %s14, 3
      %p139 = por %p137, %p138
      %p140 = scmp.ne.s32.totalorder %s132, %s135
      %p141 = scmp.eq.s32.totalorder %s14, 0
      %p142 = por %p140, %p141
      %p143 = scmp.ne.s32.totalorder %s132, %s135
      %p144 = scmp.eq.s32.totalorder %s19, 3
      %p145 = por %p143, %p144
      %p146 = scmp.ne.s32.totalorder %s135, %s136
      %p147 = scmp.eq.s32.totalorder %s19, 0
      %p148 = por %p146, %p147
      %p149 = scmp.ne.s32.totalorder %s135, %s136
      %p150 = scmp.eq.s32.totalorder %s20, 3
      %p151 = por %p149, %p150
      %p153 = scmp.ne.s32.totalorder %s136, %s152
      %p154 = scmp.eq.s32.totalorder %s20, 0
      %p155 = por %p153, %p154
      %p156 = scmp.le.s32.totalorder 1, %s14
      %p157 = scmp.lt.s32.totalorder %s14, 5
      %p158 = pnand %p156, %p157
      %p159 = pneg %p158
      // Predicated region
      $region9: #{tpu_custom_call.1} parent=5 // pred_check
        _
      $region10: #{tpu_custom_call.1} parent=5 // pred_check_branch
        %161 = sbr.rel (%p158) target = $region12
      $region11: #{tpu_custom_call.1} parent=5 // pred_region
        %s162 = ssub.s32 %s14, 1
        // Predicated region
        $region13: #{tpu_custom_call.1} parent=11 // pred_check
          %p163 = pneg %p75
        $region14: #{tpu_custom_call.1} parent=11 // pred_check_branch
          %165 = sbr.rel (%p163) target = $region16
        $region15: #{tpu_custom_call.1} parent=11 // pred_region
          %s167 = ssub.s32 2048, 2048
          %168 = vsyncadd [#allocation5], %s167
          %s169 = sshll.u32 [#allocation4], 4
          %s170 = int_to_ptr.vmem [resolvable:$true] %s169
          %175 = dma.hbm_to_vmem [thread:$0]  %s1, 2048, %s170, [#allocation5], 64, 64, 4
        $region16: #{tpu_custom_call.1} parent=11 // pred_fallthru
          _
        // Predicated region
        $region17: #{tpu_custom_call.1} parent=11 // pred_check
          %p176 = pneg %p96
        $region18: #{tpu_custom_call.1} parent=11 // pred_check_branch
          %178 = sbr.rel (%p176) target = $region20
        $region19: #{tpu_custom_call.1} parent=11 // pred_region
          _
        $region20: #{tpu_custom_call.1} parent=11 // pred_fallthru
          _
      $region12: #{tpu_custom_call.1} parent=5 // pred_fallthru
        _
      %p179 = scmp.lt.s32.totalorder %s14, 4
      // Predicated region
      $region21: #{tpu_custom_call.1} parent=5 // pred_check
        %p180 = pneg %p179
      $region22: #{tpu_custom_call.1} parent=5 // pred_check_branch
        %182 = sbr.rel (%p180) target = $region24
      $region23: #{tpu_custom_call.1} parent=5 // pred_region
        // Predicated region
        $region25: #{tpu_custom_call.1} parent=23 // pred_check
          %p183 = pneg %p48
        $region26: #{tpu_custom_call.1} parent=23 // pred_check_branch
          %185 = sbr.rel (%p183) target = $region28
        $region27: #{tpu_custom_call.1} parent=23 // pred_region
          %s186 = sand.u32 %s38, 1
          %s187 = sand.u32 %s38, 1
          %s188 = smul.addr %s187, 64
          %s189 = scalar_lea.vmem [#allocation3], %s188
          %s190 = smul.u32 16, %s21
          %s191 = smul.addr %s190, 2
          %s192 = sadd.s32 %s22, %s191
          %s193 = smul.addr %s192, 4
          %s194 = scalar_lea.vmem %s0, %s193
          // Predicated region
          $region29: #{tpu_custom_call.1} parent=27 // pred_check
            _
          $region30: #{tpu_custom_call.1} parent=27 // pred_check_branch
            %196 = sbr.rel (0) target = $region32
          $region31: #{tpu_custom_call.1} parent=27 // pred_region
            // Predicated region
            $region33: #{tpu_custom_call.1} parent=31 // pred_check
              _
            $region34: #{tpu_custom_call.1} parent=31 // pred_check_branch
              %198 = sbr.rel target = $region36
            $region35: #{tpu_custom_call.1} parent=31 // pred_region
              // Predicated region
              $region48: #{tpu_custom_call.1} parent=35 // pred_check
                _
              $region49: #{tpu_custom_call.1} parent=35 // pred_check_branch
                %243 = sbr.rel (0) target = $region51
              $region50: #{tpu_custom_call.1} parent=35 // pred_region
                loop: start=0, step=1, limit=1
                $region52: #{tpu_custom_call.1} parent=50 // loop_pre_header
                  _
                $region53: #{tpu_custom_call.1} parent=50 // loop_header
                  %s245 = sphi 0, %s249
                  %p246 = scmp.ge.s32.totalorder %s245, 1
                  %s250 = sphi %s194, %s194
                  %s251 = sphi %s189, %s189
                $region54: #{tpu_custom_call.1} parent=50 // loop_header_branch
                  %248 = sbr.rel (%p246) target = $region58
                $region55: #{tpu_custom_call.1} parent=50 // loop_body
                  _
                $region56: #{tpu_custom_call.1} parent=50 // loop_footer
                  %s249 = sadd.s32 1, %s245
                $region57: #{tpu_custom_call.1} parent=50 // loop_footer_branch
                  %244 = sbr.rel target = $region53
                $region58: #{tpu_custom_call.1} parent=50 // loop_exit
                  _
                loop: start=0, step=1, limit=1
                $region59: #{tpu_custom_call.1} parent=50 // loop_pre_header
                  _
                $region60: #{tpu_custom_call.1} parent=50 // loop_header
                  %s254 = sphi 0, %s258
                  %p255 = scmp.ge.s32.totalorder %s254, 1
                  %s259 = sphi %s194, %s194
                  %s260 = sphi %s189, %s189
                $region61: #{tpu_custom_call.1} parent=50 // loop_header_branch
                  %257 = sbr.rel (%p255) target = $region65
                $region62: #{tpu_custom_call.1} parent=50 // loop_body
                  %v261 = vld [vmem:[%s259] sm:$0xf]
                  %262 = vst [vmem:[%s260] sm:$0xf] %v261
                  %v263 = vld [vmem:[%s259 + $0x8] sm:$0xf]
                  %264 = vst [vmem:[%s260 + $0x4] sm:$0xf] %v263
                  %v265 = vld [vmem:[%s259 + $0x10] sm:$0xf]
                  %266 = vst [vmem:[%s260 + $0x8] sm:$0xf] %v265
                  %v267 = vld [vmem:[%s259 + $0x18] sm:$0xf]
                  %268 = vst [vmem:[%s260 + $0xc] sm:$0xf] %v267
                  %v269 = vld [vmem:[%s259 + $0x20] sm:$0xf]
                  %270 = vst [vmem:[%s260 + $0x10] sm:$0xf] %v269
                  %v271 = vld [vmem:[%s259 + $0x28] sm:$0xf]
                  %272 = vst [vmem:[%s260 + $0x14] sm:$0xf] %v271
                  %v273 = vld [vmem:[%s259 + $0x30] sm:$0xf]
                  %274 = vst [vmem:[%s260 + $0x18] sm:$0xf] %v273
                  %v275 = vld [vmem:[%s259 + $0x38] sm:$0xf]
                  %276 = vst [vmem:[%s260 + $0x1c] sm:$0xf] %v275
                  %v277 = vld [vmem:[%s259 + $0x40] sm:$0xf]
                  %278 = vst [vmem:[%s260 + $0x20] sm:$0xf] %v277
                  %v279 = vld [vmem:[%s259 + $0x48] sm:$0xf]
                  %280 = vst [vmem:[%s260 + $0x24] sm:$0xf] %v279
                  %v281 = vld [vmem:[%s259 + $0x50] sm:$0xf]
                  %282 = vst [vmem:[%s260 + $0x28] sm:$0xf] %v281
                  %v283 = vld [vmem:[%s259 + $0x58] sm:$0xf]
                  %284 = vst [vmem:[%s260 + $0x2c] sm:$0xf] %v283
                  %v285 = vld [vmem:[%s259 + $0x60] sm:$0xf]
                  %286 = vst [vmem:[%s260 + $0x30] sm:$0xf] %v285
                  %v287 = vld [vmem:[%s259 + $0x68] sm:$0xf]
                  %288 = vst [vmem:[%s260 + $0x34] sm:$0xf] %v287
                  %v289 = vld [vmem:[%s259 + $0x70] sm:$0xf]
                  %290 = vst [vmem:[%s260 + $0x38] sm:$0xf] %v289
                  %v291 = vld [vmem:[%s259 + $0x78] sm:$0xf]
                  %292 = vst [vmem:[%s260 + $0x3c] sm:$0xf] %v291
                $region63: #{tpu_custom_call.1} parent=50 // loop_footer
                  %s258 = sadd.s32 1, %s254
                $region64: #{tpu_custom_call.1} parent=50 // loop_footer_branch
                  %253 = sbr.rel target = $region60
                $region65: #{tpu_custom_call.1} parent=50 // loop_exit
                  _
              $region51: #{tpu_custom_call.1} parent=35 // pred_fallthru
                _
            $region36: #{tpu_custom_call.1} parent=31 // pred_fallthru
              _
            // Predicated region
            $region37: #{tpu_custom_call.1} parent=31 // pred_check
              _
            $region38: #{tpu_custom_call.1} parent=31 // pred_check_branch
              %200 = sbr.rel (0) target = $region40
            $region39: #{tpu_custom_call.1} parent=31 // pred_region
              loop: start=0, step=1, limit=1
              $region41: #{tpu_custom_call.1} parent=39 // loop_pre_header
                _
              $region42: #{tpu_custom_call.1} parent=39 // loop_header
                %s203 = sphi 0, %s207
                %p204 = scmp.ge.s32.totalorder %s203, 1
                %s208 = sphi %s194, %s194
                %s209 = sphi %s189, %s189
              $region43: #{tpu_custom_call.1} parent=39 // loop_header_branch
                %206 = sbr.rel (%p204) target = $region47
              $region44: #{tpu_custom_call.1} parent=39 // loop_body
                %v210 = vld [vmem:[%s208] sm:$0xf]
                %211 = vst [vmem:[%s209] sm:$0xf] %v210
                %v212 = vld [vmem:[%s208 + $0x8] sm:$0xf]
                %213 = vst [vmem:[%s209 + $0x4] sm:$0xf] %v212
                %v214 = vld [vmem:[%s208 + $0x10] sm:$0xf]
                %215 = vst [vmem:[%s209 + $0x8] sm:$0xf] %v214
                %v216 = vld [vmem:[%s208 + $0x18] sm:$0xf]
                %217 = vst [vmem:[%s209 + $0xc] sm:$0xf] %v216
                %v218 = vld [vmem:[%s208 + $0x20] sm:$0xf]
                %219 = vst [vmem:[%s209 + $0x10] sm:$0xf] %v218
                %v220 = vld [vmem:[%s208 + $0x28] sm:$0xf]
                %221 = vst [vmem:[%s209 + $0x14] sm:$0xf] %v220
                %v222 = vld [vmem:[%s208 + $0x30] sm:$0xf]
                %223 = vst [vmem:[%s209 + $0x18] sm:$0xf] %v222
                %v224 = vld [vmem:[%s208 + $0x38] sm:$0xf]
                %225 = vst [vmem:[%s209 + $0x1c] sm:$0xf] %v224
                %v226 = vld [vmem:[%s208 + $0x40] sm:$0xf]
                %227 = vst [vmem:[%s209 + $0x20] sm:$0xf] %v226
                %v228 = vld [vmem:[%s208 + $0x48] sm:$0xf]
                %229 = vst [vmem:[%s209 + $0x24] sm:$0xf] %v228
                %v230 = vld [vmem:[%s208 + $0x50] sm:$0xf]
                %231 = vst [vmem:[%s209 + $0x28] sm:$0xf] %v230
                %v232 = vld [vmem:[%s208 + $0x58] sm:$0xf]
                %233 = vst [vmem:[%s209 + $0x2c] sm:$0xf] %v232
                %v234 = vld [vmem:[%s208 + $0x60] sm:$0xf]
                %235 = vst [vmem:[%s209 + $0x30] sm:$0xf] %v234
                %v236 = vld [vmem:[%s208 + $0x68] sm:$0xf]
                %237 = vst [vmem:[%s209 + $0x34] sm:$0xf] %v236
                %v238 = vld [vmem:[%s208 + $0x70] sm:$0xf]
                %239 = vst [vmem:[%s209 + $0x38] sm:$0xf] %v238
                %v240 = vld [vmem:[%s208 + $0x78] sm:$0xf]
                %241 = vst [vmem:[%s209 + $0x3c] sm:$0xf] %v240
              $region45: #{tpu_custom_call.1} parent=39 // loop_footer
                %s207 = sadd.s32 1, %s203
              $region46: #{tpu_custom_call.1} parent=39 // loop_footer_branch
                %202 = sbr.rel target = $region42
              $region47: #{tpu_custom_call.1} parent=39 // loop_exit
                _
            $region40: #{tpu_custom_call.1} parent=31 // pred_fallthru
              _
          $region32: #{tpu_custom_call.1} parent=27 // pred_fallthru
            _
          %293 = vnop
        $region28: #{tpu_custom_call.1} parent=23 // pred_fallthru
          _
        // Predicated region
        $region66: #{tpu_custom_call.1} parent=23 // pred_check
          %p294 = pneg %p116
        $region67: #{tpu_custom_call.1} parent=23 // pred_check_branch
          %296 = sbr.rel (%p294) target = $region69
        $region68: #{tpu_custom_call.1} parent=23 // pred_region
          %s297 = smul.u32 16, %s21
          %p298 = scmp.lt.s32.totalorder %s297, 31
          %s299 = scalar_select %p298, %s297, 31
          %s300 = smul.addr %s299, 8
          %s301 = scalar_lea.vmem %s3, %s300
          %s302 = smul.u32 16, %s21
        $region69: #{tpu_custom_call.1} parent=23 // pred_fallthru
          _
      $region24: #{tpu_custom_call.1} parent=5 // pred_fallthru
        _
      %p303 = scmp.le.s32.totalorder 1, %s14
      %p304 = scmp.lt.s32.totalorder %s14, 5
      %p305 = pnand %p303, %p304
      %p306 = pneg %p305
      // Predicated region
      $region70: #{tpu_custom_call.1} parent=5 // pred_check
        _
      $region71: #{tpu_custom_call.1} parent=5 // pred_check_branch
        %308 = sbr.rel (%p305) target = $region73
      $region72: #{tpu_custom_call.1} parent=5 // pred_region
        %s309 = ssub.s32 %s14, 1
        %s310 = sand.u32 %s41, 1
        %s311 = sand.u32 %s41, 1
        %s312 = smul.addr %s311, 64
        %s313 = scalar_lea.vmem [#allocation3], %s312
        // Predicated region
        $region74: #{tpu_custom_call.1} parent=72 // pred_check
          %p314 = pneg %p54
        $region75: #{tpu_custom_call.1} parent=72 // pred_check_branch
          %316 = sbr.rel (%p314) target = $region77
        $region76: #{tpu_custom_call.1} parent=72 // pred_region
          _
        $region77: #{tpu_custom_call.1} parent=72 // pred_fallthru
          _
        // Predicated region
        $region78: #{tpu_custom_call.1} parent=72 // pred_check
          %p317 = pneg %p75
        $region79: #{tpu_custom_call.1} parent=72 // pred_check_branch
          %319 = sbr.rel (%p317) target = $region81
        $region80: #{tpu_custom_call.1} parent=72 // pred_region
          %320 = dma.done [#allocation5], 2048
        $region81: #{tpu_custom_call.1} parent=72 // pred_fallthru
          _
        %s321 = sand.u32 %s41, 1
        %s322 = sand.u32 %s41, 1
        %s323 = smul.addr %s322, 64
        %s324 = scalar_lea.vmem [#allocation3], %s323
        %p325 = pneg %p54
        %p326 = pneg %p51
        %p327 = pneg %p75
        %p328 = pneg %p72
        %p329 = pneg %p96
        %p330 = pneg %p93
        %s331 = smul.u32 16, %s23
        %p332 = scmp.lt.s32.totalorder %s331, 31
        %s333 = scalar_select %p332, %s331, 31
        %s334 = smul.addr %s333, 8
        %s335 = scalar_lea.vmem %s3, %s334
        %p336 = pneg %p122
        %p337 = pneg %p119
        %p338 = pneg %p148
        %p339 = pneg %p145
        %s340 = sand.u32 %s135, 1
        %s341 = scalar_lea.sflag [#allocation6], %s340
        %s342 = sand.u32 %s135, 1
        %s343 = smul.addr %s342, 8
        %s344 = scalar_lea.vmem [#allocation7], %s343
        %s345 = smul.u32 16, %s23
        %s346 = smul.u32 16, %s23
        %p347 = scmp.lt.s32.totalorder %s346, 31
        %s348 = scalar_select %p347, %s346, 31
        %s349 = smul.addr %s348, 8
        %s350 = scalar_lea.vmem %s3, %s349
        %s351 = smul.u32 16, %s23
        %p353 = scmp.eq.s32.totalorder %s24, 0
        // Predicated region
        $region82: #{tpu_custom_call.1} parent=72 // pred_check
          %p354 = pneg %p353
        $region83: #{tpu_custom_call.1} parent=72 // pred_check_branch
          %356 = sbr.rel (%p354) target = $region85
        $region84: #{tpu_custom_call.1} parent=72 // pred_region
          %357 = vst [vmem:[#allocation2] sm:$0xff] 0.0
          %358 = vst [vmem:[#allocation2 + $0x8] sm:$0xff] 0.0
          %359 = vst [vmem:[#allocation2 + $0x10] sm:$0xff] 0.0
          %360 = vst [vmem:[#allocation2 + $0x18] sm:$0xff] 0.0
          %361 = vst [vmem:[#allocation2 + $0x20] sm:$0xff] 0.0
          %362 = vst [vmem:[#allocation2 + $0x28] sm:$0xff] 0.0
          %363 = vst [vmem:[#allocation2 + $0x30] sm:$0xff] 0.0
          %364 = vst [vmem:[#allocation2 + $0x38] sm:$0xff] 0.0
          %365 = vst [vmem:[#allocation2 + $0x40] sm:$0xff] 0.0
          %366 = vst [vmem:[#allocation2 + $0x48] sm:$0xff] 0.0
          %367 = vst [vmem:[#allocation2 + $0x50] sm:$0xff] 0.0
          %368 = vst [vmem:[#allocation2 + $0x58] sm:$0xff] 0.0
          %369 = vst [vmem:[#allocation2 + $0x60] sm:$0xff] 0.0
          %370 = vst [vmem:[#allocation2 + $0x68] sm:$0xff] 0.0
          %371 = vst [vmem:[#allocation2 + $0x70] sm:$0xff] 0.0
          %372 = vst [vmem:[#allocation2 + $0x78] sm:$0xff] 0.0
        $region85: #{tpu_custom_call.1} parent=72 // pred_fallthru
          _
        %s373 = smul.u32 %s24, 128
        %v374 = vld [vmem:[#allocation2] sm:$0xff]
        %v375 = vld [vmem:[#allocation2 + $0x8] sm:$0xff]
        %v376 = vld [vmem:[#allocation2 + $0x10] sm:$0xff]
        %v377 = vld [vmem:[#allocation2 + $0x18] sm:$0xff]
        %v378 = vld [vmem:[#allocation2 + $0x20] sm:$0xff]
        %v379 = vld [vmem:[#allocation2 + $0x28] sm:$0xff]
        %v380 = vld [vmem:[#allocation2 + $0x30] sm:$0xff]
        %v381 = vld [vmem:[#allocation2 + $0x38] sm:$0xff]
        %v382 = vld [vmem:[#allocation2 + $0x40] sm:$0xff]
        %v383 = vld [vmem:[#allocation2 + $0x48] sm:$0xff]
        %v384 = vld [vmem:[#allocation2 + $0x50] sm:$0xff]
        %v385 = vld [vmem:[#allocation2 + $0x58] sm:$0xff]
        %v386 = vld [vmem:[#allocation2 + $0x60] sm:$0xff]
        %v387 = vld [vmem:[#allocation2 + $0x68] sm:$0xff]
        %v388 = vld [vmem:[#allocation2 + $0x70] sm:$0xff]
        %v389 = vld [vmem:[#allocation2 + $0x78] sm:$0xff]
        %v390 = vld [vmem:[%s313] sm:$0xf]
        %v391 = vld [vmem:[%s313 + $0x4] sm:$0xf]
        %v392 = vld [vmem:[%s313 + $0x8] sm:$0xf]
        %v393 = vld [vmem:[%s313 + $0xc] sm:$0xf]
        %v394 = vld [vmem:[%s313 + $0x10] sm:$0xf]
        %v395 = vld [vmem:[%s313 + $0x14] sm:$0xf]
        %v396 = vld [vmem:[%s313 + $0x18] sm:$0xf]
        %v397 = vld [vmem:[%s313 + $0x1c] sm:$0xf]
        %v398 = vld [vmem:[%s313 + $0x20] sm:$0xf]
        %v399 = vld [vmem:[%s313 + $0x24] sm:$0xf]
        %v400 = vld [vmem:[%s313 + $0x28] sm:$0xf]
        %v401 = vld [vmem:[%s313 + $0x2c] sm:$0xf]
        %v402 = vld [vmem:[%s313 + $0x30] sm:$0xf]
        %v403 = vld [vmem:[%s313 + $0x34] sm:$0xf]
        %v404 = vld [vmem:[%s313 + $0x38] sm:$0xf]
        %v405 = vld [vmem:[%s313 + $0x3c] sm:$0xf]
        %s406 = sshra.s32 %s373, 3
        %s407 = sand.u32 %s373, 7
        %s408 = smul.addr %s406, 4
        %s409 = scalar_lea.vmem [#allocation4], %s408
        %v410 = vld [vmem:[%s409] sm:$0xf]
        %v411 = vld [vmem:[%s409 + $0x4] sm:$0xf]
        %v412 = vld [vmem:[%s409 + $0x8] sm:$0xf]
        %v413 = vld [vmem:[%s409 + $0xc] sm:$0xf]
        %v414 = vld [vmem:[%s409 + $0x10] sm:$0xf]
        %v415 = vld [vmem:[%s409 + $0x14] sm:$0xf]
        %v416 = vld [vmem:[%s409 + $0x18] sm:$0xf]
        %v417 = vld [vmem:[%s409 + $0x1c] sm:$0xf]
        %v418 = vld [vmem:[%s409 + $0x20] sm:$0xf]
        %v419 = vld [vmem:[%s409 + $0x24] sm:$0xf]
        %v420 = vld [vmem:[%s409 + $0x28] sm:$0xf]
        %v421 = vld [vmem:[%s409 + $0x2c] sm:$0xf]
        %v422 = vld [vmem:[%s409 + $0x30] sm:$0xf]
        %v423 = vld [vmem:[%s409 + $0x34] sm:$0xf]
        %v424 = vld [vmem:[%s409 + $0x38] sm:$0xf]
        %v425 = vld [vmem:[%s409 + $0x3c] sm:$0xf]
        %v442 = vunpack.c.l.b16 %v390
        %v443 = vunpack.c.l.b16 %v391
        %v444 = vunpack.c.l.b16 %v392
        %v445 = vunpack.c.l.b16 %v393
        %v446 = vunpack.c.l.b16 %v394
        %v447 = vunpack.c.l.b16 %v395
        %v448 = vunpack.c.l.b16 %v396
        %v449 = vunpack.c.l.b16 %v397
        %v450 = vunpack.c.l.b16 %v398
        %v451 = vunpack.c.l.b16 %v399
        %v452 = vunpack.c.l.b16 %v400
        %v453 = vunpack.c.l.b16 %v401
        %v454 = vunpack.c.l.b16 %v402
        %v455 = vunpack.c.l.b16 %v403
        %v456 = vunpack.c.l.b16 %v404
        %v457 = vunpack.c.l.b16 %v405
        %v458 = vpack.c.b16 %v443, %v442
        %v459 = vpack.c.b16 %v445, %v444
        %v460 = vpack.c.b16 %v447, %v446
        %v461 = vpack.c.b16 %v449, %v448
        %v462 = vpack.c.b16 %v451, %v450
        %v463 = vpack.c.b16 %v453, %v452
        %v464 = vpack.c.b16 %v455, %v454
        %v465 = vpack.c.b16 %v457, %v456
        %v490 = vunpack.c.l.b16 %v410
        %v491 = vunpack.c.l.b16 %v411
        %v492 = vunpack.c.l.b16 %v412
        %v493 = vunpack.c.l.b16 %v413
        %v494 = vunpack.c.l.b16 %v414
        %v495 = vunpack.c.l.b16 %v415
        %v496 = vunpack.c.l.b16 %v416
        %v497 = vunpack.c.l.b16 %v417
        %v498 = vunpack.c.l.b16 %v418
        %v499 = vunpack.c.l.b16 %v419
        %v500 = vunpack.c.l.b16 %v420
        %v501 = vunpack.c.l.b16 %v421
        %v502 = vunpack.c.l.b16 %v422
        %v503 = vunpack.c.l.b16 %v423
        %v504 = vunpack.c.l.b16 %v424
        %v505 = vunpack.c.l.b16 %v425
        %v506 = vpack.c.b16 %v491, %v490
        %v507 = vpack.c.b16 %v493, %v492
        %v508 = vpack.c.b16 %v495, %v494
        %v509 = vpack.c.b16 %v497, %v496
        %v510 = vpack.c.b16 %v499, %v498
        %v511 = vpack.c.b16 %v501, %v500
        %v512 = vpack.c.b16 %v503, %v502
        %v513 = vpack.c.b16 %v505, %v504
        %522 = vmatprep.subr.bf16.mxu0 0
        %523 = vmatpush1.bf16.msra.mxu0 %v506
        %524 = vmatprep.subr.bf16.mxu0 0
        %525 = vmatpush1.bf16.msra.mxu0 %v507
        %526 = vmatprep.subr.bf16.mxu0 0
        %527 = vmatpush1.bf16.msra.mxu0 %v508
        %528 = vmatprep.subr.bf16.mxu0 0
        %529 = vmatpush1.bf16.msra.mxu0 %v509
        %530 = vmatprep.subr.bf16.mxu0 0
        %531 = vmatpush1.bf16.msra.mxu0 %v510
        %532 = vmatprep.subr.bf16.mxu0 0
        %533 = vmatpush1.bf16.msra.mxu0 %v511
        %534 = vmatprep.subr.bf16.mxu0 0
        %535 = vmatpush1.bf16.msra.mxu0 %v512
        %536 = vmatprep.subr.bf16.mxu0 0
        %537 = vmatpush1.bf16.msra.mxu0 %v513
        %538 = vmatprep.subr.bf16.mxu0 0
        %539 = vmatpush1.bf16.msra.mxu0 0
        %540 = vmatprep.subr.bf16.mxu0 0
        %541 = vmatpush1.bf16.msra.mxu0 0
        %542 = vmatprep.subr.bf16.mxu0 0
        %543 = vmatpush1.bf16.msra.mxu0 0
        %544 = vmatprep.subr.bf16.mxu0 0
        %545 = vmatpush1.bf16.msra.mxu0 0
        %546 = vmatprep.subr.bf16.mxu0 0
        %547 = vmatpush1.bf16.msra.mxu0 0
        %548 = vmatprep.subr.bf16.mxu0 0
        %549 = vmatpush1.bf16.msra.mxu0 0
        %550 = vmatprep.subr.bf16.mxu0 0
        %551 = vmatpush1.bf16.msra.mxu0 0
        %552 = vmatprep.subr.bf16.mxu0 0
        %553 = vmatpush1.bf16.msra.mxu0 0
        %554 = vmatprep.mubr.bf16.mxu0 0
        %555 = vmatmul.mubr.bf16.gmra.mrb[0].mxu0 %v458
        %v556 = vpop.f32.mrb[0].mxu0
        %v557 = vadd.f32 0.0, %v556
        %v558 = vpop.f32.mrb[0].mxu0
        %v559 = vpop.f32.mrb[0].mxu0
        %v560 = vadd.f32 0.0, %v559
        %v561 = vpop.f32.mrb[0].mxu0
        %562 = vmatprep.mubr.bf16.mxu0 0
        %563 = vmatmul.mubr.bf16.gmra.mrb[0].mxu0 %v459
        %v564 = vpop.f32.mrb[0].mxu0
        %v565 = vadd.f32 0.0, %v564
        %v566 = vpop.f32.mrb[0].mxu0
        %v567 = vpop.f32.mrb[0].mxu0
        %v568 = vadd.f32 0.0, %v567
        %v569 = vpop.f32.mrb[0].mxu0
        %570 = vmatprep.mubr.bf16.mxu0 0
        %571 = vmatmul.mubr.bf16.gmra.mrb[0].mxu0 %v460
        %v572 = vpop.f32.mrb[0].mxu0
        %v573 = vadd.f32 0.0, %v572
        %v574 = vpop.f32.mrb[0].mxu0
        %v575 = vpop.f32.mrb[0].mxu0
        %v576 = vadd.f32 0.0, %v575
        %v577 = vpop.f32.mrb[0].mxu0
        %578 = vmatprep.mubr.bf16.mxu0 0
        %579 = vmatmul.mubr.bf16.gmra.mrb[0].mxu0 %v461
        %v580 = vpop.f32.mrb[0].mxu0
        %v581 = vadd.f32 0.0, %v580
        %v582 = vpop.f32.mrb[0].mxu0
        %v583 = vpop.f32.mrb[0].mxu0
        %v584 = vadd.f32 0.0, %v583
        %v585 = vpop.f32.mrb[0].mxu0
        %586 = vmatprep.mubr.bf16.mxu0 0
        %587 = vmatmul.mubr.bf16.gmra.mrb[0].mxu0 %v462
        %v588 = vpop.f32.mrb[0].mxu0
        %v589 = vadd.f32 0.0, %v588
        %v590 = vpop.f32.mrb[0].mxu0
        %v591 = vpop.f32.mrb[0].mxu0
        %v592 = vadd.f32 0.0, %v591
        %v593 = vpop.f32.mrb[0].mxu0
        %594 = vmatprep.mubr.bf16.mxu0 0
        %595 = vmatmul.mubr.bf16.gmra.mrb[0].mxu0 %v463
        %v596 = vpop.f32.mrb[0].mxu0
        %v597 = vadd.f32 0.0, %v596
        %v598 = vpop.f32.mrb[0].mxu0
        %v599 = vpop.f32.mrb[0].mxu0
        %v600 = vadd.f32 0.0, %v599
        %v601 = vpop.f32.mrb[0].mxu0
        %602 = vmatprep.mubr.bf16.mxu0 0
        %603 = vmatmul.mubr.bf16.gmra.mrb[0].mxu0 %v464
        %v604 = vpop.f32.mrb[0].mxu0
        %v605 = vadd.f32 0.0, %v604
        %v606 = vpop.f32.mrb[0].mxu0
        %v607 = vpop.f32.mrb[0].mxu0
        %v608 = vadd.f32 0.0, %v607
        %v609 = vpop.f32.mrb[0].mxu0
        %610 = vmatprep.mubr.bf16.mxu0 0
        %611 = vmatmul.mubr.bf16.gmra.mrb[0].mxu0 %v465
        %v612 = vpop.f32.mrb[0].mxu0
        %v613 = vadd.f32 0.0, %v612
        %v614 = vpop.f32.mrb[0].mxu0
        %v615 = vpop.f32.mrb[0].mxu0
        %v616 = vadd.f32 0.0, %v615
        %v617 = vpop.f32.mrb[0].mxu0
        %618 = vdwg.mxu0
        %v619 = vadd.f32 %v374, %v557
        %v620 = vadd.f32 %v375, %v560
        %v621 = vadd.f32 %v376, %v565
        %v622 = vadd.f32 %v377, %v568
        %v623 = vadd.f32 %v378, %v573
        %v624 = vadd.f32 %v379, %v576
        %v625 = vadd.f32 %v380, %v581
        %v626 = vadd.f32 %v381, %v584
        %v627 = vadd.f32 %v382, %v589
        %v628 = vadd.f32 %v383, %v592
        %v629 = vadd.f32 %v384, %v597
        %v630 = vadd.f32 %v385, %v600
        %v631 = vadd.f32 %v386, %v605
        %v632 = vadd.f32 %v387, %v608
        %v633 = vadd.f32 %v388, %v613
        %v634 = vadd.f32 %v389, %v616
        %635 = vst [vmem:[#allocation2] sm:$0xff] %v619
        %636 = vst [vmem:[#allocation2 + $0x8] sm:$0xff] %v620
        %637 = vst [vmem:[#allocation2 + $0x10] sm:$0xff] %v621
        %638 = vst [vmem:[#allocation2 + $0x18] sm:$0xff] %v622
        %639 = vst [vmem:[#allocation2 + $0x20] sm:$0xff] %v623
        %640 = vst [vmem:[#allocation2 + $0x28] sm:$0xff] %v624
        %641 = vst [vmem:[#allocation2 + $0x30] sm:$0xff] %v625
        %642 = vst [vmem:[#allocation2 + $0x38] sm:$0xff] %v626
        %643 = vst [vmem:[#allocation2 + $0x40] sm:$0xff] %v627
        %644 = vst [vmem:[#allocation2 + $0x48] sm:$0xff] %v628
        %645 = vst [vmem:[#allocation2 + $0x50] sm:$0xff] %v629
        %646 = vst [vmem:[#allocation2 + $0x58] sm:$0xff] %v630
        %647 = vst [vmem:[#allocation2 + $0x60] sm:$0xff] %v631
        %648 = vst [vmem:[#allocation2 + $0x68] sm:$0xff] %v632
        %649 = vst [vmem:[#allocation2 + $0x70] sm:$0xff] %v633
        %650 = vst [vmem:[#allocation2 + $0x78] sm:$0xff] %v634
        %p651 = scmp.eq.s32.totalorder %s24, 1
        // Predicated region
        $region86: #{tpu_custom_call.1} parent=72 // pred_check
          %p652 = pneg %p651
        $region87: #{tpu_custom_call.1} parent=72 // pred_check_branch
          %654 = sbr.rel (%p652) target = $region89
        $region88: #{tpu_custom_call.1} parent=72 // pred_region
          %v655 = vld [vmem:[#allocation2] sm:$0xff]
          %v656 = vld [vmem:[#allocation2 + $0x8] sm:$0xff]
          %v657 = vld [vmem:[#allocation2 + $0x10] sm:$0xff]
          %v658 = vld [vmem:[#allocation2 + $0x18] sm:$0xff]
          %v659 = vld [vmem:[#allocation2 + $0x20] sm:$0xff]
          %v660 = vld [vmem:[#allocation2 + $0x28] sm:$0xff]
          %v661 = vld [vmem:[#allocation2 + $0x30] sm:$0xff]
          %v662 = vld [vmem:[#allocation2 + $0x38] sm:$0xff]
          %v663 = vld [vmem:[#allocation2 + $0x40] sm:$0xff]
          %v664 = vld [vmem:[#allocation2 + $0x48] sm:$0xff]
          %v665 = vld [vmem:[#allocation2 + $0x50] sm:$0xff]
          %v666 = vld [vmem:[#allocation2 + $0x58] sm:$0xff]
          %v667 = vld [vmem:[#allocation2 + $0x60] sm:$0xff]
          %v668 = vld [vmem:[#allocation2 + $0x68] sm:$0xff]
          %v669 = vld [vmem:[#allocation2 + $0x70] sm:$0xff]
          %v670 = vld [vmem:[#allocation2 + $0x78] sm:$0xff]
          %v671 = vld [vmem:[%s2] sm:$0x1]
          %v673 = vlaneseq
          %v674 = vshrl.u32 %v673, 7
          %v675 = vsub.s32 0, %v674
          %v676 = vrot.slane %v671, %v675
          %v678 = vadd.f32 %v655, %v676
          %v679 = vadd.f32 %v656, %v676
          %v680 = vadd.f32 %v657, %v676
          %v681 = vadd.f32 %v658, %v676
          %v682 = vadd.f32 %v659, %v676
          %v683 = vadd.f32 %v660, %v676
          %v684 = vadd.f32 %v661, %v676
          %v685 = vadd.f32 %v662, %v676
          %v686 = vadd.f32 %v663, %v676
          %v687 = vadd.f32 %v664, %v676
          %v688 = vadd.f32 %v665, %v676
          %v689 = vadd.f32 %v666, %v676
          %v690 = vadd.f32 %v667, %v676
          %v691 = vadd.f32 %v668, %v676
          %v692 = vadd.f32 %v669, %v676
          %v693 = vadd.f32 %v670, %v676
          %v694 = vmax.f32 %v678, 0.0
          %v695 = vmax.f32 %v679, 0.0
          %v696 = vmax.f32 %v680, 0.0
          %v697 = vmax.f32 %v681, 0.0
          %v698 = vmax.f32 %v682, 0.0
          %v699 = vmax.f32 %v683, 0.0
          %v700 = vmax.f32 %v684, 0.0
          %v701 = vmax.f32 %v685, 0.0
          %v702 = vmax.f32 %v686, 0.0
          %v703 = vmax.f32 %v687, 0.0
          %v704 = vmax.f32 %v688, 0.0
          %v705 = vmax.f32 %v689, 0.0
          %v706 = vmax.f32 %v690, 0.0
          %v707 = vmax.f32 %v691, 0.0
          %v708 = vmax.f32 %v692, 0.0
          %v709 = vmax.f32 %v693, 0.0
          %v710 = vld [vmem:[%s350] sm:$0xff]
          %v711 = vld [vmem:[%s350 + $0x8] sm:$0xff]
          %v712 = vld [vmem:[%s350 + $0x10] sm:$0xff]
          %v713 = vld [vmem:[%s350 + $0x18] sm:$0xff]
          %v714 = vld [vmem:[%s350 + $0x20] sm:$0xff]
          %v715 = vld [vmem:[%s350 + $0x28] sm:$0xff]
          %v716 = vld [vmem:[%s350 + $0x30] sm:$0xff]
          %v717 = vld [vmem:[%s350 + $0x38] sm:$0xff]
          %v718 = vld [vmem:[%s350 + $0x40] sm:$0xff]
          %v719 = vld [vmem:[%s350 + $0x48] sm:$0xff]
          %v720 = vld [vmem:[%s350 + $0x50] sm:$0xff]
          %v721 = vld [vmem:[%s350 + $0x58] sm:$0xff]
          %v722 = vld [vmem:[%s350 + $0x60] sm:$0xff]
          %v723 = vld [vmem:[%s350 + $0x68] sm:$0xff]
          %v724 = vld [vmem:[%s350 + $0x70] sm:$0xff]
          %v725 = vld [vmem:[%s350 + $0x78] sm:$0xff]
          %727 = vset.pattern.permute.xlu0 0
          %728 = vperm.xlu0 %727, %v710
          %v729 = vpop.permute.xlu0 %728
          %732 = vset.pattern.permute.xlu0 0
          %733 = vperm.xlu0 %732, %v711
          %v734 = vpop.permute.xlu0 %733
          %737 = vset.pattern.permute.xlu0 0
          %738 = vperm.xlu0 %737, %v712
          %v739 = vpop.permute.xlu0 %738
          %742 = vset.pattern.permute.xlu0 0
          %743 = vperm.xlu0 %742, %v713
          %v744 = vpop.permute.xlu0 %743
          %747 = vset.pattern.permute.xlu0 0
          %748 = vperm.xlu0 %747, %v714
          %v749 = vpop.permute.xlu0 %748
          %752 = vset.pattern.permute.xlu0 0
          %753 = vperm.xlu0 %752, %v715
          %v754 = vpop.permute.xlu0 %753
          %757 = vset.pattern.permute.xlu0 0
          %758 = vperm.xlu0 %757, %v716
          %v759 = vpop.permute.xlu0 %758
          %762 = vset.pattern.permute.xlu0 0
          %763 = vperm.xlu0 %762, %v717
          %v764 = vpop.permute.xlu0 %763
          %767 = vset.pattern.permute.xlu0 0
          %768 = vperm.xlu0 %767, %v718
          %v769 = vpop.permute.xlu0 %768
          %772 = vset.pattern.permute.xlu0 0
          %773 = vperm.xlu0 %772, %v719
          %v774 = vpop.permute.xlu0 %773
          %777 = vset.pattern.permute.xlu0 0
          %778 = vperm.xlu0 %777, %v720
          %v779 = vpop.permute.xlu0 %778
          %782 = vset.pattern.permute.xlu0 0
          %783 = vperm.xlu0 %782, %v721
          %v784 = vpop.permute.xlu0 %783
          %787 = vset.pattern.permute.xlu0 0
          %788 = vperm.xlu0 %787, %v722
          %v789 = vpop.permute.xlu0 %788
          %792 = vset.pattern.permute.xlu0 0
          %793 = vperm.xlu0 %792, %v723
          %v794 = vpop.permute.xlu0 %793
          %797 = vset.pattern.permute.xlu0 0
          %798 = vperm.xlu0 %797, %v724
          %v799 = vpop.permute.xlu0 %798
          %802 = vset.pattern.permute.xlu0 0
          %803 = vperm.xlu0 %802, %v725
          %v804 = vpop.permute.xlu0 %803
          %v806 = vmul.f32 %v694, %v729
          %v807 = vmul.f32 %v695, %v734
          %v808 = vmul.f32 %v696, %v739
          %v809 = vmul.f32 %v697, %v744
          %v810 = vmul.f32 %v698, %v749
          %v811 = vmul.f32 %v699, %v754
          %v812 = vmul.f32 %v700, %v759
          %v813 = vmul.f32 %v701, %v764
          %v814 = vmul.f32 %v702, %v769
          %v815 = vmul.f32 %v703, %v774
          %v816 = vmul.f32 %v704, %v779
          %v817 = vmul.f32 %v705, %v784
          %v818 = vmul.f32 %v706, %v789
          %v819 = vmul.f32 %v707, %v794
          %v820 = vmul.f32 %v708, %v799
          %v821 = vmul.f32 %v709, %v804
          %v822 = vadd.f32 %v806, %v807
          %v823 = vadd.f32 %v822, %v808
          %v824 = vadd.f32 %v823, %v809
          %v825 = vadd.f32 %v824, %v810
          %v826 = vadd.f32 %v825, %v811
          %v827 = vadd.f32 %v826, %v812
          %v828 = vadd.f32 %v827, %v813
          %v829 = vadd.f32 %v828, %v814
          %v830 = vadd.f32 %v829, %v815
          %v831 = vadd.f32 %v830, %v816
          %v832 = vadd.f32 %v831, %v817
          %v833 = vadd.f32 %v832, %v818
          %v834 = vadd.f32 %v833, %v819
          %v835 = vadd.f32 %v834, %v820
          %v836 = vadd.f32 %v835, %v821
          %v837 = vrot.slane %v836, 4
          %v838 = vadd.f32 %v836, %v837
          %v839 = vrot.slane %v838, 2
          %v840 = vadd.f32 %v838, %v839
          %v841 = vrot.slane %v840, 1
          %v842 = vadd.f32 %v840, %v841
          %843 = vst [vmem:[%s344] sm:$0xff] %v842
        $region89: #{tpu_custom_call.1} parent=72 // pred_fallthru
          _
        %s844 = sand.u32 %s135, 1
        %s845 = scalar_lea.sflag [#allocation6], %s844
        %s846 = sand.u32 %s135, 1
        %s847 = smul.addr %s846, 8
        %s848 = scalar_lea.vmem [#allocation7], %s847
        // Predicated region
        $region90: #{tpu_custom_call.1} parent=72 // pred_check
          %p849 = pneg %p145
        $region91: #{tpu_custom_call.1} parent=72 // pred_check_branch
          %851 = sbr.rel (%p849) target = $region93
        $region92: #{tpu_custom_call.1} parent=72 // pred_region
          %s853 = ssub.s32 128, 128
          %854 = vsyncadd %s845, %s853
          %s855 = smul.addr %s23, 128
          %s856 = scalar_lea.hbm %s4, %s855
          %s858 = sshll.u32 %s848, 4
          %s859 = int_to_ptr.vmem [resolvable:$true] %s858
          %861 = dma.vmem_to_hbm [thread:$0]  %s859, 128, %s856, %s845
        $region93: #{tpu_custom_call.1} parent=72 // pred_fallthru
          _
      $region73: #{tpu_custom_call.1} parent=5 // pred_fallthru
        _
      %p862 = scmp.le.s32.totalorder 2, %s14
      // Predicated region
      $region94: #{tpu_custom_call.1} parent=5 // pred_check
        %p863 = pneg %p862
      $region95: #{tpu_custom_call.1} parent=5 // pred_check_branch
        %865 = sbr.rel (%p863) target = $region97
      $region96: #{tpu_custom_call.1} parent=5 // pred_region
        %s866 = ssub.s32 %s14, 2
        // Predicated region
        $region98: #{tpu_custom_call.1} parent=96 // pred_check
          %p867 = pneg %p151
        $region99: #{tpu_custom_call.1} parent=96 // pred_check_branch
          %869 = sbr.rel (%p867) target = $region101
        $region100: #{tpu_custom_call.1} parent=96 // pred_region
          %s870 = sand.u32 %s136, 1
          %s871 = scalar_lea.sflag [#allocation6], %s870
          %s872 = sand.u32 %s136, 1
          %s873 = smul.addr %s872, 8
          %s874 = scalar_lea.vmem [#allocation7], %s873
          %875 = dma.done %s871, 128
        $region101: #{tpu_custom_call.1} parent=96 // pred_fallthru
          _
      $region97: #{tpu_custom_call.1} parent=5 // pred_fallthru
        _
    $region6: #{tpu_custom_call.1} parent=1 // loop_footer
      %s18 = sadd.s32 1, %s14
    $region7: #{tpu_custom_call.1} parent=1 // loop_footer_branch
      %13 = sbr.rel target = $region3
    $region8: #{tpu_custom_call.1} parent=1 // loop_exit
      _
    %876 = vsyncpa [#allocation5], 1
    %s877 = scalar_lea.sflag [#allocation5], 1
    %878 = vsyncpa %s877, 1
    %879 = vsyncpa [#allocation6], 1
    %s880 = scalar_lea.sflag [#allocation6], 1
    %881 = vsyncpa %s880, 1

</llo_original>
